<compile_context>
chip_gen: v5e
topology: v5e:2x2
jax: 0.10.0
libtpu: 0.0.40
codegen_flags: <defaults>
</compile_context>

<pallas_src>
import jax
import jax.numpy as jnp
from jax import lax
from jax.experimental import pallas as pl
from jax.experimental.pallas import tpu as pltpu


def _leaky_relu(x, slope=0.2):
    return jnp.where(x > 0, x, slope * x)


def _round_up(x, m):
    return (x + m - 1) // m * m


def critic_kernel(x_ref, w1_ref, b1_ref, w2_ref, b2_ref, w3_ref, b3_ref, o_ref):
    cdt = w1_ref.dtype                          # MXU input dtype (f32 or bf16)

    x = x_ref[...].astype(cdt)                  # (tile_b, D_in)

    h1 = jnp.dot(x, w1_ref[...], preferred_element_type=jnp.float32)
    h1 = _leaky_relu(h1 + b1_ref[...])          # (tile_b, 512), f32

    h2 = jnp.dot(h1.astype(cdt), w2_ref[...], preferred_element_type=jnp.float32)
    h2 = _leaky_relu(h2 + b2_ref[...])          # (tile_b, 256), f32

    # Final 256 -> 1 layer: contract w3_row (1, 256) with h2's feature axis so
    # the result lands directly lane-dense as (1, tile_b).
    h3 = lax.dot_general(
        w3_ref[...], h2,
        dimension_numbers=(((1,), (1,)), ((), ())),
        preferred_element_type=jnp.float32)     # (1, tile_b)
    o_ref[...] = h3 + b3_ref[0, 0]


def critic_forward(time_series, params, *, compute_dtype=jnp.float32):
    """time_series: (B, S, F) float32.  Returns validity: (B, 1) float32."""
    w1, b1, w2, b2, w3, b3 = params
    B = time_series.shape[0]
    d_in, h1_dim = w1.shape
    h2_dim = w2.shape[1]

    x = time_series.reshape(B, -1).astype(jnp.float32)        # (B, S*F)
    assert x.shape[1] == d_in

    # Batch tiling: sublane/MXU aligned.  Single tile for small/medium B,
    # 1024-row tiles (multiple of 128, needed for the lane-dense output slab
    # blocks) for large B; live VMEM per step stays a few MiB.
    if B <= 1024:
        tile_b = _round_up(max(B, 1), 8)
    else:
        tile_b = 1024
    b_pad = _round_up(B, tile_b)
    if b_pad != B:
        x = jnp.pad(x, ((0, b_pad - B), (0, 0)))
    grid = (b_pad // tile_b,)

    # Weights in the MXU compute dtype (halves weight DMA in bf16 on v6e/v7x);
    # biases, the w3 row and all accumulation stay f32.
    w1c = w1.astype(compute_dtype)
    w2c = w2.astype(compute_dtype)
    b1f = b1.reshape(1, h1_dim).astype(jnp.float32)
    b2f = b2.reshape(1, h2_dim).astype(jnp.float32)
    w3_row = w3.reshape(1, h2_dim).astype(jnp.float32)        # lane-dense row
    b3s = b3.reshape(1, 1).astype(jnp.float32)                # SMEM scalar

    const = lambda i: (0, 0)                                  # resident blocks
    in_specs = [
        pl.BlockSpec((tile_b, d_in), lambda i: (i, 0)),       # x (pipelined)
        pl.BlockSpec((d_in, h1_dim), const),                  # w1
        pl.BlockSpec((1, h1_dim), const),                     # b1
        pl.BlockSpec((h1_dim, h2_dim), const),                # w2
        pl.BlockSpec((1, h2_dim), const),                     # b2
        pl.BlockSpec((1, h2_dim), const),                     # w3 row
        pl.BlockSpec(memory_space=pltpu.MemorySpace.SMEM),    # b3 scalar
    ]
    out_spec = pl.BlockSpec((1, tile_b), lambda i: (0, i))    # lane-dense slab

    flops = 2 * B * (d_in * h1_dim + h1_dim * h2_dim + h2_dim)
    w_itemsize = jnp.dtype(compute_dtype).itemsize
    bytes_accessed = (x.size * 4
                      + (w1c.size + w2c.size) * w_itemsize
                      + (b1f.size + b2f.size + w3_row.size + 1) * 4
                      + b_pad * 4)

    out_row = pl.pallas_call(
        critic_kernel,
        out_shape=jax.ShapeDtypeStruct((1, b_pad), jnp.float32),
        grid=grid,
        in_specs=in_specs,
        out_specs=out_spec,
        compiler_params=pltpu.CompilerParams(
            dimension_semantics=("parallel",)),
        cost_estimate=pl.CostEstimate(
            flops=int(flops), transcendentals=0,
            bytes_accessed=int(bytes_accessed)),
    )(x, w1c, b1f, w2c, b2f, w3_row, b3s)

    return out_row[0, :B][:, None]                            # (B, 1)


def init_params(key, in_dim, h1=512, h2=256, out_dim=1):
    """Deterministic synthetic params. Weights stored as (in, out); biases (1, out)."""
    k1, k2, k3, k4, k5, k6 = jax.random.split(key, 6)

    def lin(kw, kb, din, dout):
        bound = 1.0 / jnp.sqrt(din)  # mimic torch.nn.Linear default init range
        w = jax.random.uniform(kw, (din, dout), jnp.float32, -bound, bound)
        b = jax.random.uniform(kb, (1, dout), jnp.float32, -bound, bound)
        return w, b

    w1, b1 = lin(k1, k2, in_dim, h1)
    w2, b2 = lin(k3, k4, h1, h2)
    w3, b3 = lin(k5, k6, h2, out_dim)
    return (w1, b1, w2, b2, w3, b3)


def critic_reference(time_series, params, compute_dtype=jnp.float32):
    """Pure-JAX reference.  With bf16 it mirrors the kernel's cast points."""
    w1, b1, w2, b2, w3, b3 = params
    x = time_series.reshape(time_series.shape[0], -1).astype(compute_dtype)
    h = jnp.dot(x, w1.astype(compute_dtype), preferred_element_type=jnp.float32)
    h = _leaky_relu(h + b1)
    h = jnp.dot(h.astype(compute_dtype), w2.astype(compute_dtype),
                preferred_element_type=jnp.float32)
    h = _leaky_relu(h + b2)
    return jnp.dot(h, w3, preferred_element_type=jnp.float32) + b3


if __name__ == "__main__":
    # Small shapes consistent with the module: batch=2, seq_length=8, num_features=4.
    B, S, F = 2, 8, 4
    key = jax.random.PRNGKey(0)
    k_x, k_p = jax.random.split(key)

    time_series = jax.random.normal(k_x, (B, S, F), jnp.float32)
    params = init_params(k_p, S * F)

    # f32 path (default): exact semantics of the PyTorch module.
    out = jax.block_until_ready(critic_forward(time_series, params))
    ref = critic_reference(time_series, params)
    assert out.shape == (B, 1), out.shape
    assert jnp.allclose(out, ref, atol=1e-4, rtol=1e-4), (out, ref)

    # bf16 MXU-input path (v6e/v7x fast path), compared against a matching
    # bf16-cast reference with f32 accumulation.
    out_bf16 = jax.block_until_ready(
        critic_forward(time_series, params, compute_dtype=jnp.bfloat16))
    ref_bf16 = critic_reference(time_series, params, compute_dtype=jnp.bfloat16)
    assert out_bf16.shape == (B, 1), out_bf16.shape
    assert jnp.allclose(out_bf16, ref_bf16, atol=1e-2, rtol=1e-2), (out_bf16, ref_bf16)

    print("KERNEL_OK")
</pallas_src>

<mosaic_0001>
module attributes {stable_mosaic.version = 11 : i64} {
  func.func @critic_kernel(%arg0: i32, %arg1: memref<8x32xf32, #tpu.memory_space<vmem>>, %arg2: memref<32x512xf32, #tpu.memory_space<vmem>>, %arg3: memref<1x512xf32, #tpu.memory_space<vmem>>, %arg4: memref<512x256xf32, #tpu.memory_space<vmem>>, %arg5: memref<1x256xf32, #tpu.memory_space<vmem>>, %arg6: memref<1x256xf32, #tpu.memory_space<vmem>>, %arg7: memref<1x1xf32, #tpu.memory_space<smem>>, %arg8: memref<1x8xf32, #tpu.memory_space<vmem>>) attributes {dimension_semantics = [#tpu.dimension_semantics<parallel>], iteration_bounds = array<i64: 1>, scalar_prefetch = 0 : i64, scratch_operands = 0 : i64, tpu.core_type = #tpu.core_type<tc>, window_params = [{transform_indices = @transform_0, window_bounds = array<i64: 8, 32>}, {pipeline_mode = #tpu.pipeline_mode<synchronous>, transform_indices = @transform_1, window_bounds = array<i64: 32, 512>}, {pipeline_mode = #tpu.pipeline_mode<synchronous>, transform_indices = @transform_2, window_bounds = array<i64: 1, 512>}, {pipeline_mode = #tpu.pipeline_mode<synchronous>, transform_indices = @transform_3, window_bounds = array<i64: 512, 256>}, {pipeline_mode = #tpu.pipeline_mode<synchronous>, transform_indices = @transform_4, window_bounds = array<i64: 1, 256>}, {pipeline_mode = #tpu.pipeline_mode<synchronous>, transform_indices = @transform_5, window_bounds = array<i64: 1, 256>}, {transform_indices = @transform_6, window_bounds = array<i64: 1, 1>}, {transform_indices = @transform_7, window_bounds = array<i64: 1, 8>}]} {
    %c0 = arith.constant 0 : index
    %c0_0 = arith.constant 0 : index
    %0 = vector.load %arg1[%c0, %c0_0] : memref<8x32xf32, #tpu.memory_space<vmem>>, vector<8x32xf32>
    %c0_1 = arith.constant 0 : index
    %c0_2 = arith.constant 0 : index
    %1 = vector.load %arg2[%c0_1, %c0_2] : memref<32x512xf32, #tpu.memory_space<vmem>>, vector<32x512xf32>
    %cst = arith.constant dense<0.000000e+00> : vector<8x512xf32>
    %2 = tpu.matmul %0, %1, %cst {dimension_numbers = #tpu.dot_dimension_numbers<[1], [0], [0], [1], [0, 0, 1, 1], [], []>} : vector<8x32xf32>, vector<32x512xf32>, vector<8x512xf32> -> vector<8x512xf32>
    %c0_3 = arith.constant 0 : index
    %c0_4 = arith.constant 0 : index
    %3 = vector.load %arg3[%c0_3, %c0_4] : memref<1x512xf32, #tpu.memory_space<vmem>>, vector<1x512xf32>
    %4 = vector.broadcast %3 : vector<1x512xf32> to vector<8x512xf32>
    %5 = arith.addf %2, %4 : vector<8x512xf32>
    %cst_5 = arith.constant 0.000000e+00 : f32
    %6 = vector.broadcast %cst_5 : f32 to vector<8x512xf32>
    %7 = arith.cmpf ogt, %5, %6 : vector<8x512xf32>
    %cst_6 = arith.constant 2.000000e-01 : f32
    %8 = vector.broadcast %cst_6 : f32 to vector<8x512xf32>
    %9 = arith.mulf %8, %5 : vector<8x512xf32>
    %10 = arith.select %7, %5, %9 : vector<8x512xi1>, vector<8x512xf32>
    %c0_7 = arith.constant 0 : index
    %c0_8 = arith.constant 0 : index
    %11 = vector.load %arg4[%c0_7, %c0_8] : memref<512x256xf32, #tpu.memory_space<vmem>>, vector<512x256xf32>
    %cst_9 = arith.constant dense<0.000000e+00> : vector<8x256xf32>
    %12 = tpu.matmul %10, %11, %cst_9 {dimension_numbers = #tpu.dot_dimension_numbers<[1], [0], [0], [1], [0, 0, 1, 1], [], []>} : vector<8x512xf32>, vector<512x256xf32>, vector<8x256xf32> -> vector<8x256xf32>
    %c0_10 = arith.constant 0 : index
    %c0_11 = arith.constant 0 : index
    %13 = vector.load %arg5[%c0_10, %c0_11] : memref<1x256xf32, #tpu.memory_space<vmem>>, vector<1x256xf32>
    %14 = vector.broadcast %13 : vector<1x256xf32> to vector<8x256xf32>
    %15 = arith.addf %12, %14 : vector<8x256xf32>
    %cst_12 = arith.constant 0.000000e+00 : f32
    %16 = vector.broadcast %cst_12 : f32 to vector<8x256xf32>
    %17 = arith.cmpf ogt, %15, %16 : vector<8x256xf32>
    %cst_13 = arith.constant 2.000000e-01 : f32
    %18 = vector.broadcast %cst_13 : f32 to vector<8x256xf32>
    %19 = arith.mulf %18, %15 : vector<8x256xf32>
    %20 = arith.select %17, %15, %19 : vector<8x256xi1>, vector<8x256xf32>
    %c0_14 = arith.constant 0 : index
    %c0_15 = arith.constant 0 : index
    %21 = vector.load %arg6[%c0_14, %c0_15] : memref<1x256xf32, #tpu.memory_space<vmem>>, vector<1x256xf32>
    %cst_16 = arith.constant dense<0.000000e+00> : vector<1x8xf32>
    %22 = tpu.matmul %21, %20, %cst_16 {dimension_numbers = #tpu.dot_dimension_numbers<[1], [1], [0], [0], [0, 0, 1, 0], [], []>} : vector<1x256xf32>, vector<8x256xf32>, vector<1x8xf32> -> vector<1x8xf32>
    %c0_17 = arith.constant 0 : index
    %c0_18 = arith.constant 0 : index
    %23 = memref.load %arg7[%c0_17, %c0_18] : memref<1x1xf32, #tpu.memory_space<smem>>
    %24 = vector.broadcast %23 : f32 to vector<1x8xf32>
    %25 = arith.addf %22, %24 : vector<1x8xf32>
    %c0_19 = arith.constant 0 : index
    %c0_20 = arith.constant 0 : index
    %26 = vector.load %arg8[%c0_19, %c0_20] : memref<1x8xf32, #tpu.memory_space<vmem>>, vector<1x8xf32>
    tpu.vector_store %arg8[%c0_19, %c0_20], %25 {strides = array<i32>} : memref<1x8xf32, #tpu.memory_space<vmem>>, vector<1x8xf32>,
    return
  }
  func.func @transform_0(%arg0: i32) -> (i32, i32) {
    %c0_i32 = arith.constant 0 : i32
    %c0_i32_0 = arith.constant 0 : i32
    return %arg0, %c0_i32 : i32, i32
  }
  func.func @transform_1(%arg0: i32) -> (i32, i32) {
    %c0_i32 = arith.constant 0 : i32
    %c0_i32_0 = arith.constant 0 : i32
    %c0_i32_1 = arith.constant 0 : i32
    return %c0_i32, %c0_i32_0 : i32, i32
  }
  func.func @transform_2(%arg0: i32) -> (i32, i32) {
    %c0_i32 = arith.constant 0 : i32
    %c0_i32_0 = arith.constant 0 : i32
    %c0_i32_1 = arith.constant 0 : i32
    return %c0_i32, %c0_i32_0 : i32, i32
  }
  func.func @transform_3(%arg0: i32) -> (i32, i32) {
    %c0_i32 = arith.constant 0 : i32
    %c0_i32_0 = arith.constant 0 : i32
    %c0_i32_1 = arith.constant 0 : i32
    return %c0_i32, %c0_i32_0 : i32, i32
  }
  func.func @transform_4(%arg0: i32) -> (i32, i32) {
    %c0_i32 = arith.constant 0 : i32
    %c0_i32_0 = arith.constant 0 : i32
    %c0_i32_1 = arith.constant 0 : i32
    return %c0_i32, %c0_i32_0 : i32, i32
  }
  func.func @transform_5(%arg0: i32) -> (i32, i32) {
    %c0_i32 = arith.constant 0 : i32
    %c0_i32_0 = arith.constant 0 : i32
    %c0_i32_1 = arith.constant 0 : i32
    return %c0_i32, %c0_i32_0 : i32, i32
  }
  func.func @transform_6(%arg0: i32) -> (i32, i32) {
    %c0_i32 = arith.constant 0 : i32
    %c0_i32_0 = arith.constant 0 : i32
    %c0_i32_1 = arith.constant 0 : i32
    return %c0_i32, %c0_i32_0 : i32, i32
  }
  func.func @transform_7(%arg0: i32) -> (i32, i32) {
    %c0_i32 = arith.constant 0 : i32
    %c0_i32_0 = arith.constant 0 : i32
    return %c0_i32, %arg0 : i32, i32
  }
}

</mosaic_0001>

<llo_original>
// kernel: tpu_custom_call.1
$region0: #{tpu_custom_call.1}
  #allocation0 [shape = 'u32[]', space=smem, size = 0x4, offset = 0x4, fixed_abs, tag = 'smem constant byte address 0x4 - core index']
  #allocation1 [shape = 'u32[72,128]{1,0:T(1,128)}', space=vmem, size = 0x9000, scoped, tag = 'internal scratch']
  #allocation2 [shape = 'f32[1,1]{1,0:T(1,128)S(6)}', space=smem, size = 0x200, scoped, tag = 'scoped memory for tpu_custom_call.1']
  %s0 = inlined_call_operand.hbm [shape: f32[8,32], index: 0, kind: input, shape index: {}]
  %s1 = inlined_call_operand.hbm [shape: f32[32,512], index: 1, kind: input, shape index: {}]
  %s2 = inlined_call_operand.hbm [shape: f32[1,512], index: 2, kind: input, shape index: {}]
  %s3 = inlined_call_operand.hbm [shape: f32[512,256], index: 3, kind: input, shape index: {}]
  %s4 = inlined_call_operand.vmem [shape: f32[1,256], index: 4, kind: input, shape index: {}]
  %s5 = inlined_call_operand.vmem [shape: f32[1,256], index: 5, kind: input, shape index: {}]
  %s6 = inlined_call_operand.<no memory space> [shape: f32[1,1], index: 6, kind: input, shape index: {}]
  %s7 = inlined_call_operand.hbm [shape: f32[1,8], index: 7, kind: output, shape index: {}]
  %s8 = sld [smem:[#allocation0]]
  $region54: #{tpu_custom_call.1} parent=0
    _
  %s10 = ssub.s32 1, %s8
  %s11 = scalar_select 0, %s10, %s8
  %12 = sst [smem:[#allocation2]] %s6
  $region1: #{tpu_custom_call.1} parent=0
    #allocation3 [shape = 'u8[4096]{0}', space=vmem, size = 0x1000, scoped, tag = 'input window, operand 0, single buffered']
    #allocation4 [shape = 's32[1]{0}', space=sflag, size = 0x4, scoped, tag = 'scoped memory for tpu_custom_call.1']
    #allocation5 [shape = 's32[1]{0}', space=sflag, size = 0x4, scoped, tag = 'scoped memory for tpu_custom_call.1']
    #allocation6 [shape = 'u8[65536]{0}', space=vmem, size = 0x10000, scoped, tag = 'input window, operand 1, single buffered']
    #allocation7 [shape = 's32[1]{0}', space=sflag, size = 0x4, scoped, tag = 'scoped memory for tpu_custom_call.1']
    #allocation8 [shape = 'u8[2048]{0}', space=vmem, size = 0x800, scoped, tag = 'input window, operand 2, single buffered']
    #allocation9 [shape = 'u8[524288]{0}', space=vmem, size = 0x80000, scoped, tag = 'input window, operand 3, single buffered']
    #allocation10 [shape = 's32[1]{0}', space=sflag, size = 0x4, scoped, tag = 'scoped memory for tpu_custom_call.1']
    #allocation11 [shape = 'u8[512]{0}', space=vmem, size = 0x400, scoped, tag = 'output window, operand 0, single buffered']
    %13 = vsyncpa [#allocation4], 0
    %14 = vsyncpa [#allocation7], 0
    %15 = vsyncpa [#allocation10], 0
    %16 = vsyncpa [#allocation5], 0
    // Predicated region
    $region2: #{tpu_custom_call.1} parent=1 // pred_check
      _
    $region3: #{tpu_custom_call.1} parent=1 // pred_check_branch
      %18 = sbr.rel (0) target = $region5
    $region4: #{tpu_custom_call.1} parent=1 // pred_region
      %20 = vsyncadd [#allocation4], 0
      %s22 = sshll.u32 %s0, 4
      %s23 = int_to_ptr.hbm [resolvable:$true] %s22
      %s24 = sshll.u32 [#allocation3], 4
      %s25 = int_to_ptr.vmem [resolvable:$true] %s24
      %27 = dma.hbm_to_vmem [thread:$0]  %s23, 128, %s25, [#allocation4]
    $region5: #{tpu_custom_call.1} parent=1 // pred_fallthru
      _
    // Predicated region
    $region6: #{tpu_custom_call.1} parent=1 // pred_check
      _
    $region7: #{tpu_custom_call.1} parent=1 // pred_check_branch
      %29 = sbr.rel (0) target = $region9
    $region8: #{tpu_custom_call.1} parent=1 // pred_region
      %31 = vsyncadd [#allocation7], 0
      %s32 = sshll.u32 %s1, 4
      %s33 = int_to_ptr.hbm [resolvable:$true] %s32
      %s34 = sshll.u32 [#allocation6], 4
      %s35 = int_to_ptr.vmem [resolvable:$true] %s34
      %40 = dma.hbm_to_vmem [thread:$0]  %s33, 2048, %s35, [#allocation7], 512, 512, 32
    $region9: #{tpu_custom_call.1} parent=1 // pred_fallthru
      _
    // Predicated region
    $region10: #{tpu_custom_call.1} parent=1 // pred_check
      _
    $region11: #{tpu_custom_call.1} parent=1 // pred_check_branch
      %42 = sbr.rel (0) target = $region13
    $region12: #{tpu_custom_call.1} parent=1 // pred_region
      %44 = vsyncadd [#allocation7], 0
      %s46 = sshll.u32 %s2, 4
      %s47 = int_to_ptr.hbm [resolvable:$true] %s46
      %s48 = sshll.u32 [#allocation8], 4
      %s49 = int_to_ptr.vmem [resolvable:$true] %s48
      %51 = dma.hbm_to_vmem [thread:$0]  %s47, 64, %s49, [#allocation7]
    $region13: #{tpu_custom_call.1} parent=1 // pred_fallthru
      _
    // Predicated region
    $region14: #{tpu_custom_call.1} parent=1 // pred_check
      _
    $region15: #{tpu_custom_call.1} parent=1 // pred_check_branch
      %53 = sbr.rel (0) target = $region17
    $region16: #{tpu_custom_call.1} parent=1 // pred_region
      %55 = vsyncadd [#allocation10], 0
      %s56 = sshll.u32 %s3, 4
      %s57 = int_to_ptr.hbm [resolvable:$true] %s56
      %s58 = sshll.u32 [#allocation9], 4
      %s59 = int_to_ptr.vmem [resolvable:$true] %s58
      %64 = dma.hbm_to_vmem [thread:$0]  %s57, 16384, %s59, [#allocation10], 256, 256, 16
    $region17: #{tpu_custom_call.1} parent=1 // pred_fallthru
      _
    // Predicated region
    $region18: #{tpu_custom_call.1} parent=1 // pred_check
      _
    $region19: #{tpu_custom_call.1} parent=1 // pred_check_branch
      %66 = sbr.rel (0) target = $region21
    $region20: #{tpu_custom_call.1} parent=1 // pred_region
      _
    $region21: #{tpu_custom_call.1} parent=1 // pred_fallthru
      _
    // Predicated region
    $region22: #{tpu_custom_call.1} parent=1 // pred_check
      _
    $region23: #{tpu_custom_call.1} parent=1 // pred_check_branch
      %68 = sbr.rel (0) target = $region25
    $region24: #{tpu_custom_call.1} parent=1 // pred_region
      _
    $region25: #{tpu_custom_call.1} parent=1 // pred_fallthru
      _
    // Predicated region
    $region26: #{tpu_custom_call.1} parent=1 // pred_check
      _
    $region27: #{tpu_custom_call.1} parent=1 // pred_check_branch
      %70 = sbr.rel (0) target = $region29
    $region28: #{tpu_custom_call.1} parent=1 // pred_region
      _
    $region29: #{tpu_custom_call.1} parent=1 // pred_fallthru
      _
    // Predicated region
    $region30: #{tpu_custom_call.1} parent=1 // pred_check
      _
    $region31: #{tpu_custom_call.1} parent=1 // pred_check_branch
      %72 = sbr.rel (0) target = $region33
    $region32: #{tpu_custom_call.1} parent=1 // pred_region
      %74 = dma.done [#allocation4], 128
    $region33: #{tpu_custom_call.1} parent=1 // pred_fallthru
      _
    // Predicated region
    $region34: #{tpu_custom_call.1} parent=1 // pred_check
      _
    $region35: #{tpu_custom_call.1} parent=1 // pred_check_branch
      %76 = sbr.rel (0) target = $region37
    $region36: #{tpu_custom_call.1} parent=1 // pred_region
      %78 = dma.done [#allocation7], 2048
    $region37: #{tpu_custom_call.1} parent=1 // pred_fallthru
      _
    // Predicated region
    $region38: #{tpu_custom_call.1} parent=1 // pred_check
      _
    $region39: #{tpu_custom_call.1} parent=1 // pred_check_branch
      %80 = sbr.rel (0) target = $region41
    $region40: #{tpu_custom_call.1} parent=1 // pred_region
      %82 = dma.done [#allocation7], 64
    $region41: #{tpu_custom_call.1} parent=1 // pred_fallthru
      _
    // Predicated region
    $region42: #{tpu_custom_call.1} parent=1 // pred_check
      _
    $region43: #{tpu_custom_call.1} parent=1 // pred_check_branch
      %84 = sbr.rel (0) target = $region45
    $region44: #{tpu_custom_call.1} parent=1 // pred_region
      %86 = dma.done [#allocation10], 16384
    $region45: #{tpu_custom_call.1} parent=1 // pred_fallthru
      _
    %v87 = vld [vmem:[#allocation3] sm:$0xff]
    %v88 = vld [vmem:[#allocation6] sm:$0xff]
    %v89 = vld [vmem:[#allocation6 + $0x8] sm:$0xff]
    %v90 = vld [vmem:[#allocation6 + $0x10] sm:$0xff]
    %v91 = vld [vmem:[#allocation6 + $0x18] sm:$0xff]
    %v92 = vld [vmem:[#allocation6 + $0x20] sm:$0xff]
    %v93 = vld [vmem:[#allocation6 + $0x28] sm:$0xff]
    %v94 = vld [vmem:[#allocation6 + $0x30] sm:$0xff]
    %v95 = vld [vmem:[#allocation6 + $0x38] sm:$0xff]
    %v96 = vld [vmem:[#allocation6 + $0x40] sm:$0xff]
    %v97 = vld [vmem:[#allocation6 + $0x48] sm:$0xff]
    %v98 = vld [vmem:[#allocation6 + $0x50] sm:$0xff]
    %v99 = vld [vmem:[#allocation6 + $0x58] sm:$0xff]
    %v100 = vld [vmem:[#allocation6 + $0x60] sm:$0xff]
    %v101 = vld [vmem:[#allocation6 + $0x68] sm:$0xff]
    %v102 = vld [vmem:[#allocation6 + $0x70] sm:$0xff]
    %v103 = vld [vmem:[#allocation6 + $0x78] sm:$0xff]
    %v104 = vld [vmem:[#allocation8] sm:$0xf]
    %v106 = vperm.slane %v104, 0
    %v107 = vperm.slane %v104, 1
    %v108 = vperm.slane %v104, 2
    %v109 = vperm.slane %v104, 3
    %vm114 = vcmask 261120
    %v116 = vsel %vm114, %v87, 0
    %118 = vmatpush.msra.mxu0 0.0
    %119 = vmatpush.msra.mxu0 0.0
    %120 = vmatpush.msra.mxu0 0.0
    %121 = vmatpush.msra.mxu0 0.0
    %122 = vmatpush.msra.mxu0 0.0
    %123 = vmatpush.msra.mxu0 0.0
    %124 = vmatpush.msra.mxu0 0.0
    %125 = vmatpush.msra.mxu0 0.0
    %126 = vmatpush.msra.mxu0 0.0
    %127 = vmatpush.msra.mxu0 0.0
    %128 = vmatpush.msra.mxu0 0.0
    %129 = vmatpush.msra.mxu0 0.0
    %130 = vmatpush.msra.mxu0 %v100
    %131 = vmatpush.msra.mxu0 %v96
    %132 = vmatpush.msra.mxu0 %v92
    %133 = vmatpush.msra.mxu0 %v88
    %134 = vmatmul.f32.gmra.mxu0 %v116
    %v135 = vpop.f32.mrf.mxu0
    %v136 = vadd.f32 %v106, %v135
    %137 = vdwg.mxu0
    %138 = vmatpush.msra.mxu0 0.0
    %139 = vmatpush.msra.mxu0 0.0
    %140 = vmatpush.msra.mxu0 0.0
    %141 = vmatpush.msra.mxu0 0.0
    %142 = vmatpush.msra.mxu0 0.0
    %143 = vmatpush.msra.mxu0 0.0
    %144 = vmatpush.msra.mxu0 0.0
    %145 = vmatpush.msra.mxu0 0.0
    %146 = vmatpush.msra.mxu0 0.0
    %147 = vmatpush.msra.mxu0 0.0
    %148 = vmatpush.msra.mxu0 0.0
    %149 = vmatpush.msra.mxu0 0.0
    %150 = vmatpush.msra.mxu0 %v101
    %151 = vmatpush.msra.mxu0 %v97
    %152 = vmatpush.msra.mxu0 %v93
    %153 = vmatpush.msra.mxu0 %v89
    %154 = vmatmul.f32.gmra.mxu0 %v116
    %v155 = vpop.f32.mrf.mxu0
    %v156 = vadd.f32 %v107, %v155
    %157 = vdwg.mxu0
    %158 = vmatpush.msra.mxu0 0.0
    %159 = vmatpush.msra.mxu0 0.0
    %160 = vmatpush.msra.mxu0 0.0
    %161 = vmatpush.msra.mxu0 0.0
    %162 = vmatpush.msra.mxu0 0.0
    %163 = vmatpush.msra.mxu0 0.0
    %164 = vmatpush.msra.mxu0 0.0
    %165 = vmatpush.msra.mxu0 0.0
    %166 = vmatpush.msra.mxu0 0.0
    %167 = vmatpush.msra.mxu0 0.0
    %168 = vmatpush.msra.mxu0 0.0
    %169 = vmatpush.msra.mxu0 0.0
    %170 = vmatpush.msra.mxu0 %v102
    %171 = vmatpush.msra.mxu0 %v98
    %172 = vmatpush.msra.mxu0 %v94
    %173 = vmatpush.msra.mxu0 %v90
    %174 = vmatmul.f32.gmra.mxu0 %v116
    %v175 = vpop.f32.mrf.mxu0
    %v176 = vadd.f32 %v108, %v175
    %177 = vdwg.mxu0
    %178 = vmatpush.msra.mxu0 0.0
    %179 = vmatpush.msra.mxu0 0.0
    %180 = vmatpush.msra.mxu0 0.0
    %181 = vmatpush.msra.mxu0 0.0
    %182 = vmatpush.msra.mxu0 0.0
    %183 = vmatpush.msra.mxu0 0.0
    %184 = vmatpush.msra.mxu0 0.0
    %185 = vmatpush.msra.mxu0 0.0
    %186 = vmatpush.msra.mxu0 0.0
    %187 = vmatpush.msra.mxu0 0.0
    %188 = vmatpush.msra.mxu0 0.0
    %189 = vmatpush.msra.mxu0 0.0
    %190 = vmatpush.msra.mxu0 %v103
    %191 = vmatpush.msra.mxu0 %v99
    %192 = vmatpush.msra.mxu0 %v95
    %193 = vmatpush.msra.mxu0 %v91
    %194 = vmatmul.f32.gmra.mxu0 %v116
    %v195 = vpop.f32.mrf.mxu0
    %v196 = vadd.f32 %v109, %v195
    %197 = vdwg.mxu0
    %vm198 = vcmp.gt.f32.partialorder %v136, 0.0
    %vm199 = vcmp.gt.f32.partialorder %v156, 0.0
    %vm200 = vcmp.gt.f32.partialorder %v176, 0.0
    %vm201 = vcmp.gt.f32.partialorder %v196, 0.0
    %v202 = vmul.f32 %v136, 0.2
    %v203 = vmul.f32 %v156, 0.2
    %v204 = vmul.f32 %v176, 0.2
    %v205 = vmul.f32 %v196, 0.2
    %v206 = vsel %vm198, %v136, %v202
    %v207 = vsel %vm199, %v156, %v203
    %v208 = vsel %vm200, %v176, %v204
    %v209 = vsel %vm201, %v196, %v205
    %v210 = vld [vmem:[#allocation9] sm:$0xff]
    %v211 = vld [vmem:[#allocation9 + $0x8] sm:$0xff]
    %v212 = vld [vmem:[#allocation9 + $0x10] sm:$0xff]
    %v213 = vld [vmem:[#allocation9 + $0x18] sm:$0xff]
    %v214 = vld [vmem:[#allocation9 + $0x20] sm:$0xff]
    %v215 = vld [vmem:[#allocation9 + $0x28] sm:$0xff]
    %v216 = vld [vmem:[#allocation9 + $0x30] sm:$0xff]
    %v217 = vld [vmem:[#allocation9 + $0x38] sm:$0xff]
    %v218 = vld [vmem:[#allocation9 + $0x40] sm:$0xff]
    %v219 = vld [vmem:[#allocation9 + $0x48] sm:$0xff]
    %v220 = vld [vmem:[#allocation9 + $0x50] sm:$0xff]
    %v221 = vld [vmem:[#allocation9 + $0x58] sm:$0xff]
    %v222 = vld [vmem:[#allocation9 + $0x60] sm:$0xff]
    %v223 = vld [vmem:[#allocation9 + $0x68] sm:$0xff]
    %v224 = vld [vmem:[#allocation9 + $0x70] sm:$0xff]
    %v225 = vld [vmem:[#allocation9 + $0x78] sm:$0xff]
    %v226 = vld [vmem:[#allocation9 + $0x80] sm:$0xff]
    %v227 = vld [vmem:[#allocation9 + $0x88] sm:$0xff]
    %v228 = vld [vmem:[#allocation9 + $0x90] sm:$0xff]
    %v229 = vld [vmem:[#allocation9 + $0x98] sm:$0xff]
    %v230 = vld [vmem:[#allocation9 + $0xa0] sm:$0xff]
    %v231 = vld [vmem:[#allocation9 + $0xa8] sm:$0xff]
    %v232 = vld [vmem:[#allocation9 + $0xb0] sm:$0xff]
    %v233 = vld [vmem:[#allocation9 + $0xb8] sm:$0xff]
    %v234 = vld [vmem:[#allocation9 + $0xc0] sm:$0xff]
    %v235 = vld [vmem:[#allocation9 + $0xc8] sm:$0xff]
    %v236 = vld [vmem:[#allocation9 + $0xd0] sm:$0xff]
    %v237 = vld [vmem:[#allocation9 + $0xd8] sm:$0xff]
    %v238 = vld [vmem:[#allocation9 + $0xe0] sm:$0xff]
    %v239 = vld [vmem:[#allocation9 + $0xe8] sm:$0xff]
    %v240 = vld [vmem:[#allocation9 + $0xf0] sm:$0xff]
    %v241 = vld [vmem:[#allocation9 + $0xf8] sm:$0xff]
    %v242 = vld [vmem:[#allocation9 + $0x100] sm:$0xff]
    %v243 = vld [vmem:[#allocation9 + $0x108] sm:$0xff]
    %v244 = vld [vmem:[#allocation9 + $0x110] sm:$0xff]
    %v245 = vld [vmem:[#allocation9 + $0x118] sm:$0xff]
    %v246 = vld [vmem:[#allocation9 + $0x120] sm:$0xff]
    %v247 = vld [vmem:[#allocation9 + $0x128] sm:$0xff]
    %v248 = vld [vmem:[#allocation9 + $0x130] sm:$0xff]
    %v249 = vld [vmem:[#allocation9 + $0x138] sm:$0xff]
    %v250 = vld [vmem:[#allocation9 + $0x140] sm:$0xff]
    %v251 = vld [vmem:[#allocation9 + $0x148] sm:$0xff]
    %v252 = vld [vmem:[#allocation9 + $0x150] sm:$0xff]
    %v253 = vld [vmem:[#allocation9 + $0x158] sm:$0xff]
    %v254 = vld [vmem:[#allocation9 + $0x160] sm:$0xff]
    %v255 = vld [vmem:[#allocation9 + $0x168] sm:$0xff]
    %v256 = vld [vmem:[#allocation9 + $0x170] sm:$0xff]
    %v257 = vld [vmem:[#allocation9 + $0x178] sm:$0xff]
    %v258 = vld [vmem:[#allocation9 + $0x180] sm:$0xff]
    %v259 = vld [vmem:[#allocation9 + $0x188] sm:$0xff]
    %v260 = vld [vmem:[#allocation9 + $0x190] sm:$0xff]
    %v261 = vld [vmem:[#allocation9 + $0x198] sm:$0xff]
    %v262 = vld [vmem:[#allocation9 + $0x1a0] sm:$0xff]
    %v263 = vld [vmem:[#allocation9 + $0x1a8] sm:$0xff]
    %v264 = vld [vmem:[#allocation9 + $0x1b0] sm:$0xff]
    %v265 = vld [vmem:[#allocation9 + $0x1b8] sm:$0xff]
    %v266 = vld [vmem:[#allocation9 + $0x1c0] sm:$0xff]
    %v267 = vld [vmem:[#allocation9 + $0x1c8] sm:$0xff]
    %v268 = vld [vmem:[#allocation9 + $0x1d0] sm:$0xff]
    %v269 = vld [vmem:[#allocation9 + $0x1d8] sm:$0xff]
    %v270 = vld [vmem:[#allocation9 + $0x1e0] sm:$0xff]
    %v271 = vld [vmem:[#allocation9 + $0x1e8] sm:$0xff]
    %v272 = vld [vmem:[#allocation9 + $0x1f0] sm:$0xff]
    %v273 = vld [vmem:[#allocation9 + $0x1f8] sm:$0xff]
    %v274 = vld [vmem:[#allocation9 + $0x200] sm:$0xff]
    %v275 = vld [vmem:[#allocation9 + $0x208] sm:$0xff]
    %v276 = vld [vmem:[#allocation9 + $0x210] sm:$0xff]
    %v277 = vld [vmem:[#allocation9 + $0x218] sm:$0xff]
    %v278 = vld [vmem:[#allocation9 + $0x220] sm:$0xff]
    %v279 = vld [vmem:[#allocation9 + $0x228] sm:$0xff]
    %v280 = vld [vmem:[#allocation9 + $0x230] sm:$0xff]
    %v281 = vld [vmem:[#allocation9 + $0x238] sm:$0xff]
    %v282 = vld [vmem:[#allocation9 + $0x240] sm:$0xff]
    %v283 = vld [vmem:[#allocation9 + $0x248] sm:$0xff]
    %v284 = vld [vmem:[#allocation9 + $0x250] sm:$0xff]
    %v285 = vld [vmem:[#allocation9 + $0x258] sm:$0xff]
    %v286 = vld [vmem:[#allocation9 + $0x260] sm:$0xff]
    %v287 = vld [vmem:[#allocation9 + $0x268] sm:$0xff]
    %v288 = vld [vmem:[#allocation9 + $0x270] sm:$0xff]
    %v289 = vld [vmem:[#allocation9 + $0x278] sm:$0xff]
    %v290 = vld [vmem:[#allocation9 + $0x280] sm:$0xff]
    %v291 = vld [vmem:[#allocation9 + $0x288] sm:$0xff]
    %v292 = vld [vmem:[#allocation9 + $0x290] sm:$0xff]
    %v293 = vld [vmem:[#allocation9 + $0x298] sm:$0xff]
    %v294 = vld [vmem:[#allocation9 + $0x2a0] sm:$0xff]
    %v295 = vld [vmem:[#allocation9 + $0x2a8] sm:$0xff]
    %v296 = vld [vmem:[#allocation9 + $0x2b0] sm:$0xff]
    %v297 = vld [vmem:[#allocation9 + $0x2b8] sm:$0xff]
    %v298 = vld [vmem:[#allocation9 + $0x2c0] sm:$0xff]
    %v299 = vld [vmem:[#allocation9 + $0x2c8] sm:$0xff]
    %v300 = vld [vmem:[#allocation9 + $0x2d0] sm:$0xff]
    %v301 = vld [vmem:[#allocation9 + $0x2d8] sm:$0xff]
    %v302 = vld [vmem:[#allocation9 + $0x2e0] sm:$0xff]
    %v303 = vld [vmem:[#allocation9 + $0x2e8] sm:$0xff]
    %v304 = vld [vmem:[#allocation9 + $0x2f0] sm:$0xff]
    %v305 = vld [vmem:[#allocation9 + $0x2f8] sm:$0xff]
    %v306 = vld [vmem:[#allocation9 + $0x300] sm:$0xff]
    %v307 = vld [vmem:[#allocation9 + $0x308] sm:$0xff]
    %v308 = vld [vmem:[#allocation9 + $0x310] sm:$0xff]
    %v309 = vld [vmem:[#allocation9 + $0x318] sm:$0xff]
    %v310 = vld [vmem:[#allocation9 + $0x320] sm:$0xff]
    %v311 = vld [vmem:[#allocation9 + $0x328] sm:$0xff]
    %v312 = vld [vmem:[#allocation9 + $0x330] sm:$0xff]
    %v313 = vld [vmem:[#allocation9 + $0x338] sm:$0xff]
    %v314 = vld [vmem:[#allocation9 + $0x340] sm:$0xff]
    %v315 = vld [vmem:[#allocation9 + $0x348] sm:$0xff]
    %v316 = vld [vmem:[#allocation9 + $0x350] sm:$0xff]
    %v317 = vld [vmem:[#allocation9 + $0x358] sm:$0xff]
    %v318 = vld [vmem:[#allocation9 + $0x360] sm:$0xff]
    %v319 = vld [vmem:[#allocation9 + $0x368] sm:$0xff]
    %v320 = vld [vmem:[#allocation9 + $0x370] sm:$0xff]
    %v321 = vld [vmem:[#allocation9 + $0x378] sm:$0xff]
    %v322 = vld [vmem:[#allocation9 + $0x380] sm:$0xff]
    %v323 = vld [vmem:[#allocation9 + $0x388] sm:$0xff]
    %v324 = vld [vmem:[#allocation9 + $0x390] sm:$0xff]
    %v325 = vld [vmem:[#allocation9 + $0x398] sm:$0xff]
    %v326 = vld [vmem:[#allocation9 + $0x3a0] sm:$0xff]
    %v327 = vld [vmem:[#allocation9 + $0x3a8] sm:$0xff]
    %v328 = vld [vmem:[#allocation9 + $0x3b0] sm:$0xff]
    %v329 = vld [vmem:[#allocation9 + $0x3b8] sm:$0xff]
    %v330 = vld [vmem:[#allocation9 + $0x3c0] sm:$0xff]
    %v331 = vld [vmem:[#allocation9 + $0x3c8] sm:$0xff]
    %v332 = vld [vmem:[#allocation9 + $0x3d0] sm:$0xff]
    %v333 = vld [vmem:[#allocation9 + $0x3d8] sm:$0xff]
    %v334 = vld [vmem:[#allocation9 + $0x3e0] sm:$0xff]
    %v335 = vld [vmem:[#allocation9 + $0x3e8] sm:$0xff]
    %v336 = vld [vmem:[#allocation9 + $0x3f0] sm:$0xff]
    %v337 = vld [vmem:[#allocation9 + $0x3f8] sm:$0xff]
    %v338 = vld [vmem:[%s4] sm:$0x3]
    %v340 = vperm.slane %v338, 0
    %v341 = vperm.slane %v338, 1
    %344 = vmatpush.msra.mxu0 %v240
    %345 = vmatpush.msra.mxu0 %v238
    %346 = vmatpush.msra.mxu0 %v236
    %347 = vmatpush.msra.mxu0 %v234
    %348 = vmatpush.msra.mxu0 %v232
    %349 = vmatpush.msra.mxu0 %v230
    %350 = vmatpush.msra.mxu0 %v228
    %351 = vmatpush.msra.mxu0 %v226
    %352 = vmatpush.msra.mxu0 %v224
    %353 = vmatpush.msra.mxu0 %v222
    %354 = vmatpush.msra.mxu0 %v220
    %355 = vmatpush.msra.mxu0 %v218
    %356 = vmatpush.msra.mxu0 %v216
    %357 = vmatpush.msra.mxu0 %v214
    %358 = vmatpush.msra.mxu0 %v212
    %359 = vmatpush.msra.mxu0 %v210
    %360 = vmatmul.f32.gmra.mxu0 %v206
    %v361 = vpop.f32.mrf.mxu0
    %v362 = vadd.f32 %v340, %v361
    %363 = vdwg.mxu0
    %364 = vmatpush.msra.mxu0 %v272
    %365 = vmatpush.msra.mxu0 %v270
    %366 = vmatpush.msra.mxu0 %v268
    %367 = vmatpush.msra.mxu0 %v266
    %368 = vmatpush.msra.mxu0 %v264
    %369 = vmatpush.msra.mxu0 %v262
    %370 = vmatpush.msra.mxu0 %v260
    %371 = vmatpush.msra.mxu0 %v258
    %372 = vmatpush.msra.mxu0 %v256
    %373 = vmatpush.msra.mxu0 %v254
    %374 = vmatpush.msra.mxu0 %v252
    %375 = vmatpush.msra.mxu0 %v250
    %376 = vmatpush.msra.mxu0 %v248
    %377 = vmatpush.msra.mxu0 %v246
    %378 = vmatpush.msra.mxu0 %v244
    %379 = vmatpush.msra.mxu0 %v242
    %380 = vmatmul.f32.gmra.mxu0 %v207
    %v381 = vpop.f32.mrf.mxu0
    %v382 = vadd.f32 %v362, %v381
    %383 = vdwg.mxu0
    %384 = vmatpush.msra.mxu0 %v304
    %385 = vmatpush.msra.mxu0 %v302
    %386 = vmatpush.msra.mxu0 %v300
    %387 = vmatpush.msra.mxu0 %v298
    %388 = vmatpush.msra.mxu0 %v296
    %389 = vmatpush.msra.mxu0 %v294
    %390 = vmatpush.msra.mxu0 %v292
    %391 = vmatpush.msra.mxu0 %v290
    %392 = vmatpush.msra.mxu0 %v288
    %393 = vmatpush.msra.mxu0 %v286
    %394 = vmatpush.msra.mxu0 %v284
    %395 = vmatpush.msra.mxu0 %v282
    %396 = vmatpush.msra.mxu0 %v280
    %397 = vmatpush.msra.mxu0 %v278
    %398 = vmatpush.msra.mxu0 %v276
    %399 = vmatpush.msra.mxu0 %v274
    %400 = vmatmul.f32.gmra.mxu0 %v208
    %v401 = vpop.f32.mrf.mxu0
    %v402 = vadd.f32 %v382, %v401
    %403 = vdwg.mxu0
    %404 = vmatpush.msra.mxu0 %v336
    %405 = vmatpush.msra.mxu0 %v334
    %406 = vmatpush.msra.mxu0 %v332
    %407 = vmatpush.msra.mxu0 %v330
    %408 = vmatpush.msra.mxu0 %v328
    %409 = vmatpush.msra.mxu0 %v326
    %410 = vmatpush.msra.mxu0 %v324
    %411 = vmatpush.msra.mxu0 %v322
    %412 = vmatpush.msra.mxu0 %v320
    %413 = vmatpush.msra.mxu0 %v318
    %414 = vmatpush.msra.mxu0 %v316
    %415 = vmatpush.msra.mxu0 %v314
    %416 = vmatpush.msra.mxu0 %v312
    %417 = vmatpush.msra.mxu0 %v310
    %418 = vmatpush.msra.mxu0 %v308
    %419 = vmatpush.msra.mxu0 %v306
    %420 = vmatmul.f32.gmra.mxu0 %v209
    %v421 = vpop.f32.mrf.mxu0
    %v422 = vadd.f32 %v402, %v421
    %423 = vdwg.mxu0
    %424 = vmatpush.msra.mxu0 %v241
    %425 = vmatpush.msra.mxu0 %v239
    %426 = vmatpush.msra.mxu0 %v237
    %427 = vmatpush.msra.mxu0 %v235
    %428 = vmatpush.msra.mxu0 %v233
    %429 = vmatpush.msra.mxu0 %v231
    %430 = vmatpush.msra.mxu0 %v229
    %431 = vmatpush.msra.mxu0 %v227
    %432 = vmatpush.msra.mxu0 %v225
    %433 = vmatpush.msra.mxu0 %v223
    %434 = vmatpush.msra.mxu0 %v221
    %435 = vmatpush.msra.mxu0 %v219
    %436 = vmatpush.msra.mxu0 %v217
    %437 = vmatpush.msra.mxu0 %v215
    %438 = vmatpush.msra.mxu0 %v213
    %439 = vmatpush.msra.mxu0 %v211
    %440 = vmatmul.f32.gmra.mxu0 %v206
    %v441 = vpop.f32.mrf.mxu0
    %v442 = vadd.f32 %v341, %v441
    %443 = vdwg.mxu0
    %444 = vmatpush.msra.mxu0 %v273
    %445 = vmatpush.msra.mxu0 %v271
    %446 = vmatpush.msra.mxu0 %v269
    %447 = vmatpush.msra.mxu0 %v267
    %448 = vmatpush.msra.mxu0 %v265
    %449 = vmatpush.msra.mxu0 %v263
    %450 = vmatpush.msra.mxu0 %v261
    %451 = vmatpush.msra.mxu0 %v259
    %452 = vmatpush.msra.mxu0 %v257
    %453 = vmatpush.msra.mxu0 %v255
    %454 = vmatpush.msra.mxu0 %v253
    %455 = vmatpush.msra.mxu0 %v251
    %456 = vmatpush.msra.mxu0 %v249
    %457 = vmatpush.msra.mxu0 %v247
    %458 = vmatpush.msra.mxu0 %v245
    %459 = vmatpush.msra.mxu0 %v243
    %460 = vmatmul.f32.gmra.mxu0 %v207
    %v461 = vpop.f32.mrf.mxu0
    %v462 = vadd.f32 %v442, %v461
    %463 = vdwg.mxu0
    %464 = vmatpush.msra.mxu0 %v305
    %465 = vmatpush.msra.mxu0 %v303
    %466 = vmatpush.msra.mxu0 %v301
    %467 = vmatpush.msra.mxu0 %v299
    %468 = vmatpush.msra.mxu0 %v297
    %469 = vmatpush.msra.mxu0 %v295
    %470 = vmatpush.msra.mxu0 %v293
    %471 = vmatpush.msra.mxu0 %v291
    %472 = vmatpush.msra.mxu0 %v289
    %473 = vmatpush.msra.mxu0 %v287
    %474 = vmatpush.msra.mxu0 %v285
    %475 = vmatpush.msra.mxu0 %v283
    %476 = vmatpush.msra.mxu0 %v281
    %477 = vmatpush.msra.mxu0 %v279
    %478 = vmatpush.msra.mxu0 %v277
    %479 = vmatpush.msra.mxu0 %v275
    %480 = vmatmul.f32.gmra.mxu0 %v208
    %v481 = vpop.f32.mrf.mxu0
    %v482 = vadd.f32 %v462, %v481
    %483 = vdwg.mxu0
    %484 = vmatpush.msra.mxu0 %v337
    %485 = vmatpush.msra.mxu0 %v335
    %486 = vmatpush.msra.mxu0 %v333
    %487 = vmatpush.msra.mxu0 %v331
    %488 = vmatpush.msra.mxu0 %v329
    %489 = vmatpush.msra.mxu0 %v327
    %490 = vmatpush.msra.mxu0 %v325
    %491 = vmatpush.msra.mxu0 %v323
    %492 = vmatpush.msra.mxu0 %v321
    %493 = vmatpush.msra.mxu0 %v319
    %494 = vmatpush.msra.mxu0 %v317
    %495 = vmatpush.msra.mxu0 %v315
    %496 = vmatpush.msra.mxu0 %v313
    %497 = vmatpush.msra.mxu0 %v311
    %498 = vmatpush.msra.mxu0 %v309
    %499 = vmatpush.msra.mxu0 %v307
    %500 = vmatmul.f32.gmra.mxu0 %v209
    %v501 = vpop.f32.mrf.mxu0
    %v502 = vadd.f32 %v482, %v501
    %503 = vdwg.mxu0
    %vm504 = vcmp.gt.f32.partialorder %v422, 0.0
    %vm505 = vcmp.gt.f32.partialorder %v502, 0.0
    %v506 = vmul.f32 %v422, 0.2
    %v507 = vmul.f32 %v502, 0.2
    %v508 = vsel %vm504, %v422, %v506
    %v509 = vsel %vm505, %v502, %v507
    %v510 = vld [vmem:[%s5] sm:$0x3]
    %s511 = sld [smem:[#allocation2]]
    %v512 = vstv %s511
    %v514 = vperm.slane %v510, 0
    %v515 = vperm.slane %v510, 1
    %518 = vmatpush.xpose.msra.mxu0 0.0
    %519 = vmatpush.xpose.msra.mxu0 0.0
    %520 = vmatpush.xpose.msra.mxu0 0.0
    %521 = vmatpush.xpose.msra.mxu0 0.0
    %522 = vmatpush.xpose.msra.mxu0 0.0
    %523 = vmatpush.xpose.msra.mxu0 0.0
    %524 = vmatpush.xpose.msra.mxu0 0.0
    %525 = vmatpush.xpose.msra.mxu0 0.0
    %526 = vmatpush.xpose.msra.mxu0 0.0
    %527 = vmatpush.xpose.msra.mxu0 0.0
    %528 = vmatpush.xpose.msra.mxu0 0.0
    %529 = vmatpush.xpose.msra.mxu0 0.0
    %530 = vmatpush.xpose.msra.mxu0 0.0
    %531 = vmatpush.xpose.msra.mxu0 0.0
    %532 = vmatpush.xpose.msra.mxu0 0.0
    %533 = vmatpush.xpose.msra.mxu0 %v508
    %534 = vmatmul.f32.gmra.mxu0 %v514
    %v535 = vpop.f32.mrf.mxu0
    %v536 = vadd.f32 %v512, %v535
    %537 = vdwg.mxu0
    %538 = vmatpush.xpose.msra.mxu0 0.0
    %539 = vmatpush.xpose.msra.mxu0 0.0
    %540 = vmatpush.xpose.msra.mxu0 0.0
    %541 = vmatpush.xpose.msra.mxu0 0.0
    %542 = vmatpush.xpose.msra.mxu0 0.0
    %543 = vmatpush.xpose.msra.mxu0 0.0
    %544 = vmatpush.xpose.msra.mxu0 0.0
    %545 = vmatpush.xpose.msra.mxu0 0.0
    %546 = vmatpush.xpose.msra.mxu0 0.0
    %547 = vmatpush.xpose.msra.mxu0 0.0
    %548 = vmatpush.xpose.msra.mxu0 0.0
    %549 = vmatpush.xpose.msra.mxu0 0.0
    %550 = vmatpush.xpose.msra.mxu0 0.0
    %551 = vmatpush.xpose.msra.mxu0 0.0
    %552 = vmatpush.xpose.msra.mxu0 0.0
    %553 = vmatpush.xpose.msra.mxu0 %v509
    %554 = vmatmul.f32.gmra.mxu0 %v515
    %v555 = vpop.f32.mrf.mxu0
    %v556 = vadd.f32 %v536, %v555
    %557 = vdwg.mxu0
    %vm558 = vcmask 57344
    %559 = vst.msk [vmem:[#allocation11] sm:$0x1] %vm558, %v556
    // Predicated region
    $region46: #{tpu_custom_call.1} parent=1 // pred_check
      _
    $region47: #{tpu_custom_call.1} parent=1 // pred_check_branch
      %561 = sbr.rel (0) target = $region49
    $region48: #{tpu_custom_call.1} parent=1 // pred_region
      %563 = vsyncadd [#allocation5], 0
      %s565 = sshll.u32 [#allocation11], 4
      %s566 = int_to_ptr.vmem [resolvable:$true] %s565
      %s567 = sshll.u32 %s7, 4
      %s568 = int_to_ptr.hbm [resolvable:$true] %s567
      %570 = dma.vmem_to_hbm [thread:$0]  %s566, 16, %s568, [#allocation5]
    $region49: #{tpu_custom_call.1} parent=1 // pred_fallthru
      _
    // Predicated region
    $region50: #{tpu_custom_call.1} parent=1 // pred_check
      _
    $region51: #{tpu_custom_call.1} parent=1 // pred_check_branch
      %572 = sbr.rel (0) target = $region53
    $region52: #{tpu_custom_call.1} parent=1 // pred_region
      %574 = dma.done [#allocation5], 16
    $region53: #{tpu_custom_call.1} parent=1 // pred_fallthru
      _
    %575 = vsyncpa [#allocation4], 1
    %576 = vsyncpa [#allocation7], 1
    %577 = vsyncpa [#allocation10], 1
    %578 = vsyncpa [#allocation5], 1

</llo_original>
